<compile_context>
chip_gen: v5e
topology: v5e:2x2
jax: 0.10.0
libtpu: 0.0.40
codegen_flags: <defaults>
</compile_context>

<pallas_src>
import jax
import jax.numpy as jnp
from jax.experimental import pallas as pl
from jax.experimental.pallas import tpu as pltpu


def _linear_seq_attn_kernel(x_ref, mask_ref, w_ref, out_ref):
    # x_ref:    (TB, L, H)  native dtype (f32 / bf16)
    # mask_ref: (TB, L)     int32, nonzero = padding
    # w_ref:    (1, H)      x dtype  (nn.Linear(H, 1).weight)
    # out_ref:  (TB, L)     f32
    x = x_ref[...]                                       # native dtype, no f32 copy
    w = w_ref[...]                                       # (1, H), native dtype

    # scores_i = <w, x_i>: elementwise product in native dtype, f32-accumulated lane
    # reduction over H.  Bias is dropped (softmax-invariant scalar per-row shift).
    scores = jnp.sum((x * w[None, :, :]).astype(jnp.float32), axis=-1)   # (TB, L) f32

    # masked_fill_(mask, -inf); NaN rows for all-padding rows match PyTorch.
    scores = jnp.where(mask_ref[...] != 0, -jnp.inf, scores)

    # Single-pass softmax over the sequence (lane) axis; exact normalization.
    m = jnp.max(scores, axis=-1, keepdims=True)          # (TB, 1)
    e = jnp.exp(scores - m)                               # EUP
    s = jnp.sum(e, axis=-1, keepdims=True)                # (TB, 1)
    out_ref[...] = (e / s).astype(out_ref.dtype)


def _round_up(v, m):
    return (v + m - 1) // m * m


def _vmem_limit_bytes():
    """Scoped VMEM limit derived from the chip: ~3/4 of physical VMEM
    (96 MiB on 128 MiB v5e/v6e, 48 MiB on v7x's 64 MiB per-TensorCore)."""
    cap = None
    try:
        cap = getattr(pltpu.get_tpu_info(), "vmem_capacity_bytes", None)
    except Exception:
        cap = None
    if not cap:
        cap = 64 * 1024 * 1024                 # conservative fallback (v7x per-TC)
    return min(max((cap * 3) // 4, 32 * 1024 * 1024), 96 * 1024 * 1024)


def _choose_batch_tile(B, L, H, x_itemsize, budget_bytes):
    """Largest batch tile that divides B, is a multiple of 8, fits the VMEM budget
    (lane/sublane padding + double buffers + compute temps included), and leaves the
    grid with >= 2 steps so ("parallel",) can use both TensorCores on v7x."""
    if B < 16 or B % 8 != 0:
        return B                               # tiny / ragged batch: single full-extent block
    sub = 8 * 4 // x_itemsize                  # sublane multiple for x's dtype (8 f32 / 16 bf16)
    xpad = _round_up(L, sub) * _round_up(H, 128)   # lane+sublane padded elems per batch row
    lpad = _round_up(L, 128)
    per_row = (2 * xpad * x_itemsize           # double-buffered x block
               + 2 * xpad * 4                  # product temp + f32 copy (compiler scratch)
               + (2 + 2 + 4) * lpad * 4)       # mask/out double buffers + f32 softmax temps
    tb = max(8, min(B, (budget_bytes // per_row) // 8 * 8))
    tb = min(tb, max(8, (B // 2) // 8 * 8))    # >= 2 grid steps (v7x megacore); no-op v5e/v6e
    while tb > 8 and B % tb:
        tb -= 8
    return tb if B % tb == 0 else B


def linear_seq_attn(x, x_mask, weight, bias=None, *, batch_tile=None):
    """x: (B, L, H) f32/bf16; x_mask: (B, L) bool/int (1 = pad); weight: (1, H);
    bias: (1,) -- accepted for API parity but unused (softmax-invariant)."""
    B, L, H = x.shape
    itemsize = jnp.dtype(x.dtype).itemsize
    vmem_limit = _vmem_limit_bytes()
    budget = (vmem_limit * 3) // 4             # ~25% headroom for compiler scratch
    tb = batch_tile if batch_tile is not None else _choose_batch_tile(
        B, L, H, itemsize, budget)
    assert B % tb == 0 and (tb == B or tb % 8 == 0), (B, tb)

    mask_i = x_mask.astype(jnp.int32)          # tiny vs x; no float round-trip
    w = weight.reshape(1, H).astype(x.dtype)   # native dtype to the kernel
    del bias                                   # scalar per-row shift: no-op under softmax

    cost = pl.CostEstimate(
        flops=2 * B * L * H + 5 * B * L,
        transcendentals=B * L,
        bytes_accessed=B * L * H * itemsize + B * L * 4 + B * L * 4)

    return pl.pallas_call(
        _linear_seq_attn_kernel,
        out_shape=jax.ShapeDtypeStruct((B, L), jnp.float32),
        grid_spec=pltpu.PrefetchScalarGridSpec(
            num_scalar_prefetch=0,
            grid=(B // tb,),
            in_specs=[
                pl.BlockSpec((tb, L, H), lambda i: (i, 0, 0)),   # x     (native dtype)
                pl.BlockSpec((tb, L), lambda i: (i, 0)),         # mask  (int32)
                pl.BlockSpec((1, H), lambda i: (0, 0)),          # weight
            ],
            out_specs=pl.BlockSpec((tb, L), lambda i: (i, 0)),   # alpha (f32)
        ),
        compiler_params=pltpu.CompilerParams(
            dimension_semantics=("parallel",),   # shards batch tiles across v7x's 2 TCs
            vmem_limit_bytes=vmem_limit,
        ),
        cost_estimate=cost,
    )(x, mask_i, w)


def _reference(x, x_mask, weight, bias):
    scores = jnp.einsum("blh,h->bl", x, weight.reshape(-1)) + bias.reshape(())
    scores = jnp.where(x_mask, -jnp.inf, scores)
    return jax.nn.softmax(scores, axis=-1)


if __name__ == "__main__":
    key = jax.random.PRNGKey(0)

    def run_case(B, L, H, dtype, tol):
        kx, kw, kb, km = jax.random.split(jax.random.fold_in(key, B * 1000 + L), 4)
        x = jax.random.normal(kx, (B, L, H), dtype=jnp.float32).astype(dtype)
        bound = 1.0 / float(H) ** 0.5
        weight = jax.random.uniform(kw, (1, H), minval=-bound, maxval=bound,
                                    dtype=jnp.float32)
        bias = jax.random.uniform(kb, (1,), minval=-bound, maxval=bound,
                                  dtype=jnp.float32)
        # mask: 1 = padding, 0 = valid; at least one valid token per row.
        lens = jax.random.randint(km, (B,), 1, L + 1)
        x_mask = jnp.arange(L)[None, :] >= lens[:, None]          # bool

        alpha = linear_seq_attn(x, x_mask, weight, bias)
        jax.block_until_ready(alpha)

        ref = _reference(x.astype(jnp.float32), x_mask, weight, bias)
        assert alpha.shape == (B, L)
        assert jnp.allclose(alpha, ref, atol=tol, rtol=tol)
        assert jnp.allclose(jnp.sum(alpha, axis=-1), 1.0, atol=1e-3)

    # Tiled, pipelined path: auto tile sizer picks tb=8 (>=2 grid steps), grid=(2,),
    # lane-dense L=128 output.
    run_case(16, 128, 32, jnp.float32, tol=2e-3)
    # Full-extent fallback path (tiny batch) + bf16 native-dtype streaming.
    run_case(2, 8, 32, jnp.bfloat16, tol=1e-2)

    print("KERNEL_OK")
</pallas_src>

<mosaic_0001>
module attributes {stable_mosaic.version = 11 : i64} {
  func.func @_linear_seq_attn_kernel(%arg0: i32, %arg1: memref<8x128x32xf32, #tpu.memory_space<vmem>>, %arg2: memref<8x128xi32, #tpu.memory_space<vmem>>, %arg3: memref<1x32xf32, #tpu.memory_space<vmem>>, %arg4: memref<8x128xf32, #tpu.memory_space<vmem>>) attributes {dimension_semantics = [#tpu.dimension_semantics<parallel>], iteration_bounds = array<i64: 2>, scalar_prefetch = 0 : i64, scratch_operands = 0 : i64, tpu.core_type = #tpu.core_type<tc>, window_params = [{transform_indices = @transform_0, window_bounds = array<i64: 8, 128, 32>}, {transform_indices = @transform_1, window_bounds = array<i64: 8, 128>}, {pipeline_mode = #tpu.pipeline_mode<synchronous>, transform_indices = @transform_2, window_bounds = array<i64: 1, 32>}, {transform_indices = @transform_3, window_bounds = array<i64: 8, 128>}]} {
    %c0 = arith.constant 0 : index
    %c0_0 = arith.constant 0 : index
    %c0_1 = arith.constant 0 : index
    %0 = vector.load %arg1[%c0, %c0_0, %c0_1] : memref<8x128x32xf32, #tpu.memory_space<vmem>>, vector<8x128x32xf32>
    %c0_2 = arith.constant 0 : index
    %c0_3 = arith.constant 0 : index
    %1 = vector.load %arg3[%c0_2, %c0_3] : memref<1x32xf32, #tpu.memory_space<vmem>>, vector<1x32xf32>
    %2 = vector.shape_cast %1 : vector<1x32xf32> to vector<1x1x32xf32>
    %3 = vector.broadcast %2 : vector<1x1x32xf32> to vector<8x128x32xf32>
    %4 = arith.mulf %0, %3 : vector<8x128x32xf32>
    %cst = arith.constant dense<0.000000e+00> : vector<8x128xf32>
    %5 = vector.multi_reduction <add>, %4, %cst [2] : vector<8x128x32xf32> to vector<8x128xf32>
    %c0_4 = arith.constant 0 : index
    %c0_5 = arith.constant 0 : index
    %6 = vector.load %arg2[%c0_4, %c0_5] : memref<8x128xi32, #tpu.memory_space<vmem>>, vector<8x128xi32>
    %c0_i32 = arith.constant 0 : i32
    %7 = vector.broadcast %c0_i32 : i32 to vector<8x128xi32>
    %8 = arith.cmpi ne, %6, %7 : vector<8x128xi32>
    %cst_6 = arith.constant 0xFF800000 : f32
    %9 = vector.broadcast %cst_6 : f32 to vector<8x128xf32>
    %10 = arith.select %8, %9, %5 : vector<8x128xi1>, vector<8x128xf32>
    %cst_7 = arith.constant dense<0xFF800000> : vector<8xf32>
    %11 = vector.multi_reduction <maximumf>, %10, %cst_7 [1] : vector<8x128xf32> to vector<8xf32>
    %12 = vector.shape_cast %11 : vector<8xf32> to vector<8x1xf32>
    %13 = vector.broadcast %12 : vector<8x1xf32> to vector<8x128xf32>
    %14 = arith.subf %10, %13 : vector<8x128xf32>
    %15 = math.exp %14 : vector<8x128xf32>
    %cst_8 = arith.constant dense<0.000000e+00> : vector<8xf32>
    %16 = vector.multi_reduction <add>, %15, %cst_8 [1] : vector<8x128xf32> to vector<8xf32>
    %17 = vector.shape_cast %16 : vector<8xf32> to vector<8x1xf32>
    %18 = vector.broadcast %17 : vector<8x1xf32> to vector<8x128xf32>
    %19 = arith.divf %15, %18 : vector<8x128xf32>
    %c0_9 = arith.constant 0 : index
    %c0_10 = arith.constant 0 : index
    %20 = vector.load %arg4[%c0_9, %c0_10] : memref<8x128xf32, #tpu.memory_space<vmem>>, vector<8x128xf32>
    tpu.vector_store %arg4[%c0_9, %c0_10], %19 {strides = array<i32>} : memref<8x128xf32, #tpu.memory_space<vmem>>, vector<8x128xf32>,
    return
  }
  func.func @transform_0(%arg0: i32) -> (i32, i32, i32) {
    %c0_i32 = arith.constant 0 : i32
    %c0_i32_0 = arith.constant 0 : i32
    %c0_i32_1 = arith.constant 0 : i32
    return %arg0, %c0_i32, %c0_i32_0 : i32, i32, i32
  }
  func.func @transform_1(%arg0: i32) -> (i32, i32) {
    %c0_i32 = arith.constant 0 : i32
    %c0_i32_0 = arith.constant 0 : i32
    return %arg0, %c0_i32 : i32, i32
  }
  func.func @transform_2(%arg0: i32) -> (i32, i32) {
    %c0_i32 = arith.constant 0 : i32
    %c0_i32_0 = arith.constant 0 : i32
    %c0_i32_1 = arith.constant 0 : i32
    return %c0_i32, %c0_i32_0 : i32, i32
  }
  func.func @transform_3(%arg0: i32) -> (i32, i32) {
    %c0_i32 = arith.constant 0 : i32
    %c0_i32_0 = arith.constant 0 : i32
    return %arg0, %c0_i32 : i32, i32
  }
}

</mosaic_0001>

<llo_original>
// kernel: tpu_custom_call.1
$region0: #{tpu_custom_call.1}
  #allocation0 [shape = 'u32[]', space=smem, size = 0x4, offset = 0x4, fixed_abs, tag = 'smem constant byte address 0x4 - core index']
  #allocation1 [shape = 'u32[72,128]{1,0:T(1,128)}', space=vmem, size = 0x9000, scoped, tag = 'internal scratch']
  %s0 = inlined_call_operand.vmem [shape: f32[16,128,32], index: 0, kind: input, shape index: {}]
  %s1 = inlined_call_operand.vmem [shape: s32[16,128], index: 1, kind: input, shape index: {}]
  %s2 = inlined_call_operand.vmem [shape: f32[1,32], index: 2, kind: input, shape index: {}]
  %s3 = inlined_call_operand.hbm [shape: f32[16,128], index: 3, kind: output, shape index: {}]
  %s4 = sld [smem:[#allocation0]]
  $region45: #{tpu_custom_call.1} parent=0
    _
  %s6 = ssub.s32 1, %s4
  %s7 = scalar_select 0, %s6, %s4
  $region1: #{tpu_custom_call.1} parent=0
    #allocation2 [shape = 'u8[8192]{0}', space=vmem, size = 0x2000, scoped, tag = 'output window, operand 0']
    #allocation3 [shape = 's32[2]{0}', space=sflag, size = 0x8, scoped, tag = 'scoped memory for tpu_custom_call.1']
    %8 = vsyncpa [#allocation3], 0
    %s9 = scalar_lea.sflag [#allocation3], 1
    %10 = vsyncpa %s9, 0
    loop: start=0, step=1, limit=4
    $region2: #{tpu_custom_call.1} parent=1 // loop_pre_header
      _
    $region3: #{tpu_custom_call.1} parent=1 // loop_header
      %s12 = sphi 0, %s16
      %p13 = scmp.ge.s32.totalorder %s12, 4
      %s22 = sphi 0, %s24
      %s25 = sphi 0, %s22
      %s26 = sphi 0, %s25
      %s42 = sphi 0, %s26
      %s48 = sphi 0, %s50
      %s51 = sphi 0, %s48
      %s52 = sphi 0, %s51
      %s68 = sphi 0, %s52
      %s72 = sphi 0, %s72
      %s74 = sphi 0, %s72
      %s75 = sphi 0, %s74
      %s89 = sphi 0, %s75
      %s95 = sphi 0, %s97
      %s98 = sphi 0, %s95
      %s99 = sphi 0, %s98
      %s115 = sphi 0, %s99
    $region4: #{tpu_custom_call.1} parent=1 // loop_header_branch
      %15 = sbr.rel (%p13) target = $region8
    $region5: #{tpu_custom_call.1} parent=1 // loop_body
      %s17 = ssub.s32 %s12, 1
      %s18 = ssub.s32 %s12, 2
      %s19 = sadd.s32 %s12, 1
      %s20 = ssub.s32 %s12, %s19
      %p21 = scmp.eq.s32.totalorder %s20, 0
      %s23 = sadd.s32 %s22, 1
      %s24 = scalar_select %p21, %s22, %s23
      %p27 = pneg %p21
      %p28 = scmp.eq.s32.totalorder %s12, 1
      %p29 = por %p27, %p28
      %p30 = scmp.ne.s32.totalorder %s22, %s25
      %p31 = scmp.eq.s32.totalorder %s12, 0
      %p32 = por %p30, %p31
      %p33 = scmp.ne.s32.totalorder %s22, %s25
      %p34 = scmp.eq.s32.totalorder %s17, 1
      %p35 = por %p33, %p34
      %p36 = scmp.ne.s32.totalorder %s25, %s26
      %p37 = scmp.eq.s32.totalorder %s17, 0
      %p38 = por %p36, %p37
      %p39 = scmp.ne.s32.totalorder %s25, %s26
      %p40 = scmp.eq.s32.totalorder %s18, 1
      %p41 = por %p39, %p40
      %p43 = scmp.ne.s32.totalorder %s26, %s42
      %p44 = scmp.eq.s32.totalorder %s18, 0
      %p45 = por %p43, %p44
      %s46 = ssub.s32 %s12, %s19
      %p47 = scmp.eq.s32.totalorder %s46, 0
      %s49 = sadd.s32 %s48, 1
      %s50 = scalar_select %p47, %s48, %s49
      %p53 = pneg %p47
      %p54 = scmp.eq.s32.totalorder %s12, 1
      %p55 = por %p53, %p54
      %p56 = scmp.ne.s32.totalorder %s48, %s51
      %p57 = scmp.eq.s32.totalorder %s12, 0
      %p58 = por %p56, %p57
      %p59 = scmp.ne.s32.totalorder %s48, %s51
      %p60 = scmp.eq.s32.totalorder %s17, 1
      %p61 = por %p59, %p60
      %p62 = scmp.ne.s32.totalorder %s51, %s52
      %p63 = scmp.eq.s32.totalorder %s17, 0
      %p64 = por %p62, %p63
      %p65 = scmp.ne.s32.totalorder %s51, %s52
      %p66 = scmp.eq.s32.totalorder %s18, 1
      %p67 = por %p65, %p66
      %p69 = scmp.ne.s32.totalorder %s52, %s68
      %p70 = scmp.eq.s32.totalorder %s18, 0
      %p71 = por %p69, %p70
      %s73 = sadd.s32 %s72, 1
      %p76 = scmp.eq.s32.totalorder %s12, 1
      %p77 = scmp.ne.s32.totalorder %s72, %s74
      %p78 = scmp.eq.s32.totalorder %s12, 0
      %p79 = por %p77, %p78
      %p80 = scmp.ne.s32.totalorder %s72, %s74
      %p81 = scmp.eq.s32.totalorder %s17, 1
      %p82 = por %p80, %p81
      %p83 = scmp.ne.s32.totalorder %s74, %s75
      %p84 = scmp.eq.s32.totalorder %s17, 0
      %p85 = por %p83, %p84
      %p86 = scmp.ne.s32.totalorder %s74, %s75
      %p87 = scmp.eq.s32.totalorder %s18, 1
      %p88 = por %p86, %p87
      %p90 = scmp.ne.s32.totalorder %s75, %s89
      %p91 = scmp.eq.s32.totalorder %s18, 0
      %p92 = por %p90, %p91
      %s93 = ssub.s32 %s12, %s19
      %p94 = scmp.eq.s32.totalorder %s93, 0
      %s96 = sadd.s32 %s95, 1
      %s97 = scalar_select %p94, %s95, %s96
      %p100 = pneg %p94
      %p101 = scmp.eq.s32.totalorder %s12, 1
      %p102 = por %p100, %p101
      %p103 = scmp.ne.s32.totalorder %s95, %s98
      %p104 = scmp.eq.s32.totalorder %s12, 0
      %p105 = por %p103, %p104
      %p106 = scmp.ne.s32.totalorder %s95, %s98
      %p107 = scmp.eq.s32.totalorder %s17, 1
      %p108 = por %p106, %p107
      %p109 = scmp.ne.s32.totalorder %s98, %s99
      %p110 = scmp.eq.s32.totalorder %s17, 0
      %p111 = por %p109, %p110
      %p112 = scmp.ne.s32.totalorder %s98, %s99
      %p113 = scmp.eq.s32.totalorder %s18, 1
      %p114 = por %p112, %p113
      %p116 = scmp.ne.s32.totalorder %s99, %s115
      %p117 = scmp.eq.s32.totalorder %s18, 0
      %p118 = por %p116, %p117
      %p119 = scmp.le.s32.totalorder 1, %s12
      %p120 = scmp.lt.s32.totalorder %s12, 3
      %p121 = pnand %p119, %p120
      %p122 = pneg %p121
      // Predicated region
      $region9: #{tpu_custom_call.1} parent=5 // pred_check
        _
      $region10: #{tpu_custom_call.1} parent=5 // pred_check_branch
        %124 = sbr.rel (%p121) target = $region12
      $region11: #{tpu_custom_call.1} parent=5 // pred_region
        %s125 = ssub.s32 %s12, 1
        // Predicated region
        $region13: #{tpu_custom_call.1} parent=11 // pred_check
          %p126 = pneg %p85
        $region14: #{tpu_custom_call.1} parent=11 // pred_check_branch
          %128 = sbr.rel (%p126) target = $region16
        $region15: #{tpu_custom_call.1} parent=11 // pred_region
          _
        $region16: #{tpu_custom_call.1} parent=11 // pred_fallthru
          _
      $region12: #{tpu_custom_call.1} parent=5 // pred_fallthru
        _
      %p129 = scmp.lt.s32.totalorder %s12, 2
      // Predicated region
      $region17: #{tpu_custom_call.1} parent=5 // pred_check
        %p130 = pneg %p129
      $region18: #{tpu_custom_call.1} parent=5 // pred_check_branch
        %132 = sbr.rel (%p130) target = $region20
      $region19: #{tpu_custom_call.1} parent=5 // pred_region
        // Predicated region
        $region21: #{tpu_custom_call.1} parent=19 // pred_check
          %p133 = pneg %p32
        $region22: #{tpu_custom_call.1} parent=19 // pred_check_branch
          %135 = sbr.rel (%p133) target = $region24
        $region23: #{tpu_custom_call.1} parent=19 // pred_region
          %s136 = smul.u32 8, %s12
          %p137 = scmp.lt.s32.totalorder %s136, 15
          %s138 = scalar_select %p137, %s136, 15
          %s139 = smul.addr %s138, 16
          %s140 = smul.addr %s139, 8
          %s141 = scalar_lea.vmem %s0, %s140
          %s142 = smul.u32 8, %s12
        $region24: #{tpu_custom_call.1} parent=19 // pred_fallthru
          _
        // Predicated region
        $region25: #{tpu_custom_call.1} parent=19 // pred_check
          %p143 = pneg %p58
        $region26: #{tpu_custom_call.1} parent=19 // pred_check_branch
          %145 = sbr.rel (%p143) target = $region28
        $region27: #{tpu_custom_call.1} parent=19 // pred_region
          %p146 = scmp.lt.s32.totalorder %s12, 1
          %s147 = scalar_select %p146, %s12, 1
          %s148 = smul.addr %s147, 8
          %s149 = scalar_lea.vmem %s1, %s148
        $region28: #{tpu_custom_call.1} parent=19 // pred_fallthru
          _
      $region20: #{tpu_custom_call.1} parent=5 // pred_fallthru
        _
      %p150 = scmp.le.s32.totalorder 1, %s12
      %p151 = scmp.lt.s32.totalorder %s12, 3
      %p152 = pnand %p150, %p151
      %p153 = pneg %p152
      // Predicated region
      $region29: #{tpu_custom_call.1} parent=5 // pred_check
        _
      $region30: #{tpu_custom_call.1} parent=5 // pred_check_branch
        %155 = sbr.rel (%p152) target = $region32
      $region31: #{tpu_custom_call.1} parent=5 // pred_region
        %s156 = ssub.s32 %s12, 1
        %s157 = smul.u32 8, %s17
        %p158 = scmp.lt.s32.totalorder %s157, 15
        %s159 = scalar_select %p158, %s157, 15
        %s160 = smul.addr %s159, 16
        %s161 = smul.addr %s160, 8
        %s162 = scalar_lea.vmem %s0, %s161
        %p163 = pneg %p38
        %p164 = pneg %p35
        %p165 = scmp.lt.s32.totalorder %s17, 1
        %s166 = scalar_select %p165, %s17, 1
        %s167 = smul.addr %s166, 8
        %s168 = scalar_lea.vmem %s1, %s167
        %p169 = pneg %p64
        %p170 = pneg %p61
        %p171 = pneg %p85
        %p172 = pneg %p82
        %p173 = pneg %p111
        %p174 = pneg %p108
        %s175 = sand.u32 %s98, 1
        %s176 = scalar_lea.sflag [#allocation3], %s175
        %s177 = sand.u32 %s98, 1
        %s178 = smul.addr %s177, 8
        %s179 = scalar_lea.vmem [#allocation2], %s178
        %s180 = smul.u32 8, %s17
        %p181 = scmp.lt.s32.totalorder %s180, 15
        %s182 = scalar_select %p181, %s180, 15
        %s183 = smul.addr %s182, 16
        %s184 = smul.addr %s183, 8
        %s185 = scalar_lea.vmem %s0, %s184
        %s186 = smul.u32 8, %s17
        %p187 = scmp.lt.s32.totalorder %s17, 1
        %s188 = scalar_select %p187, %s17, 1
        %s189 = smul.addr %s188, 8
        %s190 = scalar_lea.vmem %s1, %s189
        %v191 = vld [vmem:[%s185] sm:$0xff]
        %v192 = vld [vmem:[%s185 + $0x8] sm:$0xff]
        %v193 = vld [vmem:[%s185 + $0x10] sm:$0xff]
        %v194 = vld [vmem:[%s185 + $0x18] sm:$0xff]
        %v195 = vld [vmem:[%s185 + $0x20] sm:$0xff]
        %v196 = vld [vmem:[%s185 + $0x28] sm:$0xff]
        %v197 = vld [vmem:[%s185 + $0x30] sm:$0xff]
        %v198 = vld [vmem:[%s185 + $0x38] sm:$0xff]
        %v199 = vld [vmem:[%s185 + $0x40] sm:$0xff]
        %v200 = vld [vmem:[%s185 + $0x48] sm:$0xff]
        %v201 = vld [vmem:[%s185 + $0x50] sm:$0xff]
        %v202 = vld [vmem:[%s185 + $0x58] sm:$0xff]
        %v203 = vld [vmem:[%s185 + $0x60] sm:$0xff]
        %v204 = vld [vmem:[%s185 + $0x68] sm:$0xff]
        %v205 = vld [vmem:[%s185 + $0x70] sm:$0xff]
        %v206 = vld [vmem:[%s185 + $0x78] sm:$0xff]
        %v207 = vld [vmem:[%s185 + $0x80] sm:$0xff]
        %v208 = vld [vmem:[%s185 + $0x88] sm:$0xff]
        %v209 = vld [vmem:[%s185 + $0x90] sm:$0xff]
        %v210 = vld [vmem:[%s185 + $0x98] sm:$0xff]
        %v211 = vld [vmem:[%s185 + $0xa0] sm:$0xff]
        %v212 = vld [vmem:[%s185 + $0xa8] sm:$0xff]
        %v213 = vld [vmem:[%s185 + $0xb0] sm:$0xff]
        %v214 = vld [vmem:[%s185 + $0xb8] sm:$0xff]
        %v215 = vld [vmem:[%s185 + $0xc0] sm:$0xff]
        %v216 = vld [vmem:[%s185 + $0xc8] sm:$0xff]
        %v217 = vld [vmem:[%s185 + $0xd0] sm:$0xff]
        %v218 = vld [vmem:[%s185 + $0xd8] sm:$0xff]
        %v219 = vld [vmem:[%s185 + $0xe0] sm:$0xff]
        %v220 = vld [vmem:[%s185 + $0xe8] sm:$0xff]
        %v221 = vld [vmem:[%s185 + $0xf0] sm:$0xff]
        %v222 = vld [vmem:[%s185 + $0xf8] sm:$0xff]
        %v223 = vld [vmem:[%s185 + $0x100] sm:$0xff]
        %v224 = vld [vmem:[%s185 + $0x108] sm:$0xff]
        %v225 = vld [vmem:[%s185 + $0x110] sm:$0xff]
        %v226 = vld [vmem:[%s185 + $0x118] sm:$0xff]
        %v227 = vld [vmem:[%s185 + $0x120] sm:$0xff]
        %v228 = vld [vmem:[%s185 + $0x128] sm:$0xff]
        %v229 = vld [vmem:[%s185 + $0x130] sm:$0xff]
        %v230 = vld [vmem:[%s185 + $0x138] sm:$0xff]
        %v231 = vld [vmem:[%s185 + $0x140] sm:$0xff]
        %v232 = vld [vmem:[%s185 + $0x148] sm:$0xff]
        %v233 = vld [vmem:[%s185 + $0x150] sm:$0xff]
        %v234 = vld [vmem:[%s185 + $0x158] sm:$0xff]
        %v235 = vld [vmem:[%s185 + $0x160] sm:$0xff]
        %v236 = vld [vmem:[%s185 + $0x168] sm:$0xff]
        %v237 = vld [vmem:[%s185 + $0x170] sm:$0xff]
        %v238 = vld [vmem:[%s185 + $0x178] sm:$0xff]
        %v239 = vld [vmem:[%s185 + $0x180] sm:$0xff]
        %v240 = vld [vmem:[%s185 + $0x188] sm:$0xff]
        %v241 = vld [vmem:[%s185 + $0x190] sm:$0xff]
        %v242 = vld [vmem:[%s185 + $0x198] sm:$0xff]
        %v243 = vld [vmem:[%s185 + $0x1a0] sm:$0xff]
        %v244 = vld [vmem:[%s185 + $0x1a8] sm:$0xff]
        %v245 = vld [vmem:[%s185 + $0x1b0] sm:$0xff]
        %v246 = vld [vmem:[%s185 + $0x1b8] sm:$0xff]
        %v247 = vld [vmem:[%s185 + $0x1c0] sm:$0xff]
        %v248 = vld [vmem:[%s185 + $0x1c8] sm:$0xff]
        %v249 = vld [vmem:[%s185 + $0x1d0] sm:$0xff]
        %v250 = vld [vmem:[%s185 + $0x1d8] sm:$0xff]
        %v251 = vld [vmem:[%s185 + $0x1e0] sm:$0xff]
        %v252 = vld [vmem:[%s185 + $0x1e8] sm:$0xff]
        %v253 = vld [vmem:[%s185 + $0x1f0] sm:$0xff]
        %v254 = vld [vmem:[%s185 + $0x1f8] sm:$0xff]
        %v255 = vld [vmem:[%s185 + $0x200] sm:$0xff]
        %v256 = vld [vmem:[%s185 + $0x208] sm:$0xff]
        %v257 = vld [vmem:[%s185 + $0x210] sm:$0xff]
        %v258 = vld [vmem:[%s185 + $0x218] sm:$0xff]
        %v259 = vld [vmem:[%s185 + $0x220] sm:$0xff]
        %v260 = vld [vmem:[%s185 + $0x228] sm:$0xff]
        %v261 = vld [vmem:[%s185 + $0x230] sm:$0xff]
        %v262 = vld [vmem:[%s185 + $0x238] sm:$0xff]
        %v263 = vld [vmem:[%s185 + $0x240] sm:$0xff]
        %v264 = vld [vmem:[%s185 + $0x248] sm:$0xff]
        %v265 = vld [vmem:[%s185 + $0x250] sm:$0xff]
        %v266 = vld [vmem:[%s185 + $0x258] sm:$0xff]
        %v267 = vld [vmem:[%s185 + $0x260] sm:$0xff]
        %v268 = vld [vmem:[%s185 + $0x268] sm:$0xff]
        %v269 = vld [vmem:[%s185 + $0x270] sm:$0xff]
        %v270 = vld [vmem:[%s185 + $0x278] sm:$0xff]
        %v271 = vld [vmem:[%s185 + $0x280] sm:$0xff]
        %v272 = vld [vmem:[%s185 + $0x288] sm:$0xff]
        %v273 = vld [vmem:[%s185 + $0x290] sm:$0xff]
        %v274 = vld [vmem:[%s185 + $0x298] sm:$0xff]
        %v275 = vld [vmem:[%s185 + $0x2a0] sm:$0xff]
        %v276 = vld [vmem:[%s185 + $0x2a8] sm:$0xff]
        %v277 = vld [vmem:[%s185 + $0x2b0] sm:$0xff]
        %v278 = vld [vmem:[%s185 + $0x2b8] sm:$0xff]
        %v279 = vld [vmem:[%s185 + $0x2c0] sm:$0xff]
        %v280 = vld [vmem:[%s185 + $0x2c8] sm:$0xff]
        %v281 = vld [vmem:[%s185 + $0x2d0] sm:$0xff]
        %v282 = vld [vmem:[%s185 + $0x2d8] sm:$0xff]
        %v283 = vld [vmem:[%s185 + $0x2e0] sm:$0xff]
        %v284 = vld [vmem:[%s185 + $0x2e8] sm:$0xff]
        %v285 = vld [vmem:[%s185 + $0x2f0] sm:$0xff]
        %v286 = vld [vmem:[%s185 + $0x2f8] sm:$0xff]
        %v287 = vld [vmem:[%s185 + $0x300] sm:$0xff]
        %v288 = vld [vmem:[%s185 + $0x308] sm:$0xff]
        %v289 = vld [vmem:[%s185 + $0x310] sm:$0xff]
        %v290 = vld [vmem:[%s185 + $0x318] sm:$0xff]
        %v291 = vld [vmem:[%s185 + $0x320] sm:$0xff]
        %v292 = vld [vmem:[%s185 + $0x328] sm:$0xff]
        %v293 = vld [vmem:[%s185 + $0x330] sm:$0xff]
        %v294 = vld [vmem:[%s185 + $0x338] sm:$0xff]
        %v295 = vld [vmem:[%s185 + $0x340] sm:$0xff]
        %v296 = vld [vmem:[%s185 + $0x348] sm:$0xff]
        %v297 = vld [vmem:[%s185 + $0x350] sm:$0xff]
        %v298 = vld [vmem:[%s185 + $0x358] sm:$0xff]
        %v299 = vld [vmem:[%s185 + $0x360] sm:$0xff]
        %v300 = vld [vmem:[%s185 + $0x368] sm:$0xff]
        %v301 = vld [vmem:[%s185 + $0x370] sm:$0xff]
        %v302 = vld [vmem:[%s185 + $0x378] sm:$0xff]
        %v303 = vld [vmem:[%s185 + $0x380] sm:$0xff]
        %v304 = vld [vmem:[%s185 + $0x388] sm:$0xff]
        %v305 = vld [vmem:[%s185 + $0x390] sm:$0xff]
        %v306 = vld [vmem:[%s185 + $0x398] sm:$0xff]
        %v307 = vld [vmem:[%s185 + $0x3a0] sm:$0xff]
        %v308 = vld [vmem:[%s185 + $0x3a8] sm:$0xff]
        %v309 = vld [vmem:[%s185 + $0x3b0] sm:$0xff]
        %v310 = vld [vmem:[%s185 + $0x3b8] sm:$0xff]
        %v311 = vld [vmem:[%s185 + $0x3c0] sm:$0xff]
        %v312 = vld [vmem:[%s185 + $0x3c8] sm:$0xff]
        %v313 = vld [vmem:[%s185 + $0x3d0] sm:$0xff]
        %v314 = vld [vmem:[%s185 + $0x3d8] sm:$0xff]
        %v315 = vld [vmem:[%s185 + $0x3e0] sm:$0xff]
        %v316 = vld [vmem:[%s185 + $0x3e8] sm:$0xff]
        %v317 = vld [vmem:[%s185 + $0x3f0] sm:$0xff]
        %v318 = vld [vmem:[%s185 + $0x3f8] sm:$0xff]
        %v319 = vld [vmem:[%s2] sm:$0x1]
        %v321 = vperm.slane %v319, 0
        %v323 = vmul.f32 %v191, %v321
        %v324 = vmul.f32 %v192, %v321
        %v325 = vmul.f32 %v193, %v321
        %v326 = vmul.f32 %v194, %v321
        %v327 = vmul.f32 %v195, %v321
        %v328 = vmul.f32 %v196, %v321
        %v329 = vmul.f32 %v197, %v321
        %v330 = vmul.f32 %v198, %v321
        %v331 = vmul.f32 %v199, %v321
        %v332 = vmul.f32 %v200, %v321
        %v333 = vmul.f32 %v201, %v321
        %v334 = vmul.f32 %v202, %v321
        %v335 = vmul.f32 %v203, %v321
        %v336 = vmul.f32 %v204, %v321
        %v337 = vmul.f32 %v205, %v321
        %v338 = vmul.f32 %v206, %v321
        %v339 = vmul.f32 %v207, %v321
        %v340 = vmul.f32 %v208, %v321
        %v341 = vmul.f32 %v209, %v321
        %v342 = vmul.f32 %v210, %v321
        %v343 = vmul.f32 %v211, %v321
        %v344 = vmul.f32 %v212, %v321
        %v345 = vmul.f32 %v213, %v321
        %v346 = vmul.f32 %v214, %v321
        %v347 = vmul.f32 %v215, %v321
        %v348 = vmul.f32 %v216, %v321
        %v349 = vmul.f32 %v217, %v321
        %v350 = vmul.f32 %v218, %v321
        %v351 = vmul.f32 %v219, %v321
        %v352 = vmul.f32 %v220, %v321
        %v353 = vmul.f32 %v221, %v321
        %v354 = vmul.f32 %v222, %v321
        %v355 = vmul.f32 %v223, %v321
        %v356 = vmul.f32 %v224, %v321
        %v357 = vmul.f32 %v225, %v321
        %v358 = vmul.f32 %v226, %v321
        %v359 = vmul.f32 %v227, %v321
        %v360 = vmul.f32 %v228, %v321
        %v361 = vmul.f32 %v229, %v321
        %v362 = vmul.f32 %v230, %v321
        %v363 = vmul.f32 %v231, %v321
        %v364 = vmul.f32 %v232, %v321
        %v365 = vmul.f32 %v233, %v321
        %v366 = vmul.f32 %v234, %v321
        %v367 = vmul.f32 %v235, %v321
        %v368 = vmul.f32 %v236, %v321
        %v369 = vmul.f32 %v237, %v321
        %v370 = vmul.f32 %v238, %v321
        %v371 = vmul.f32 %v239, %v321
        %v372 = vmul.f32 %v240, %v321
        %v373 = vmul.f32 %v241, %v321
        %v374 = vmul.f32 %v242, %v321
        %v375 = vmul.f32 %v243, %v321
        %v376 = vmul.f32 %v244, %v321
        %v377 = vmul.f32 %v245, %v321
        %v378 = vmul.f32 %v246, %v321
        %v379 = vmul.f32 %v247, %v321
        %v380 = vmul.f32 %v248, %v321
        %v381 = vmul.f32 %v249, %v321
        %v382 = vmul.f32 %v250, %v321
        %v383 = vmul.f32 %v251, %v321
        %v384 = vmul.f32 %v252, %v321
        %v385 = vmul.f32 %v253, %v321
        %v386 = vmul.f32 %v254, %v321
        %v387 = vmul.f32 %v255, %v321
        %v388 = vmul.f32 %v256, %v321
        %v389 = vmul.f32 %v257, %v321
        %v390 = vmul.f32 %v258, %v321
        %v391 = vmul.f32 %v259, %v321
        %v392 = vmul.f32 %v260, %v321
        %v393 = vmul.f32 %v261, %v321
        %v394 = vmul.f32 %v262, %v321
        %v395 = vmul.f32 %v263, %v321
        %v396 = vmul.f32 %v264, %v321
        %v397 = vmul.f32 %v265, %v321
        %v398 = vmul.f32 %v266, %v321
        %v399 = vmul.f32 %v267, %v321
        %v400 = vmul.f32 %v268, %v321
        %v401 = vmul.f32 %v269, %v321
        %v402 = vmul.f32 %v270, %v321
        %v403 = vmul.f32 %v271, %v321
        %v404 = vmul.f32 %v272, %v321
        %v405 = vmul.f32 %v273, %v321
        %v406 = vmul.f32 %v274, %v321
        %v407 = vmul.f32 %v275, %v321
        %v408 = vmul.f32 %v276, %v321
        %v409 = vmul.f32 %v277, %v321
        %v410 = vmul.f32 %v278, %v321
        %v411 = vmul.f32 %v279, %v321
        %v412 = vmul.f32 %v280, %v321
        %v413 = vmul.f32 %v281, %v321
        %v414 = vmul.f32 %v282, %v321
        %v415 = vmul.f32 %v283, %v321
        %v416 = vmul.f32 %v284, %v321
        %v417 = vmul.f32 %v285, %v321
        %v418 = vmul.f32 %v286, %v321
        %v419 = vmul.f32 %v287, %v321
        %v420 = vmul.f32 %v288, %v321
        %v421 = vmul.f32 %v289, %v321
        %v422 = vmul.f32 %v290, %v321
        %v423 = vmul.f32 %v291, %v321
        %v424 = vmul.f32 %v292, %v321
        %v425 = vmul.f32 %v293, %v321
        %v426 = vmul.f32 %v294, %v321
        %v427 = vmul.f32 %v295, %v321
        %v428 = vmul.f32 %v296, %v321
        %v429 = vmul.f32 %v297, %v321
        %v430 = vmul.f32 %v298, %v321
        %v431 = vmul.f32 %v299, %v321
        %v432 = vmul.f32 %v300, %v321
        %v433 = vmul.f32 %v301, %v321
        %v434 = vmul.f32 %v302, %v321
        %v435 = vmul.f32 %v303, %v321
        %v436 = vmul.f32 %v304, %v321
        %v437 = vmul.f32 %v305, %v321
        %v438 = vmul.f32 %v306, %v321
        %v439 = vmul.f32 %v307, %v321
        %v440 = vmul.f32 %v308, %v321
        %v441 = vmul.f32 %v309, %v321
        %v442 = vmul.f32 %v310, %v321
        %v443 = vmul.f32 %v311, %v321
        %v444 = vmul.f32 %v312, %v321
        %v445 = vmul.f32 %v313, %v321
        %v446 = vmul.f32 %v314, %v321
        %v447 = vmul.f32 %v315, %v321
        %v448 = vmul.f32 %v316, %v321
        %v449 = vmul.f32 %v317, %v321
        %v450 = vmul.f32 %v318, %v321
        %vm451 = vcmask 261120
        %v452 = vsel %vm451, %v323, 0.0
        %453 = vadd.xlane.f32.xlu0 %v452
        %v454 = vpop.xlane.xlu0 %453
        %v455 = vsel %vm451, %v324, 0.0
        %456 = vadd.xlane.f32.xlu0 %v455
        %v457 = vpop.xlane.xlu0 %456
        %v458 = vsel %vm451, %v325, 0.0
        %459 = vadd.xlane.f32.xlu0 %v458
        %v460 = vpop.xlane.xlu0 %459
        %v461 = vsel %vm451, %v326, 0.0
        %462 = vadd.xlane.f32.xlu0 %v461
        %v463 = vpop.xlane.xlu0 %462
        %v464 = vsel %vm451, %v327, 0.0
        %465 = vadd.xlane.f32.xlu0 %v464
        %v466 = vpop.xlane.xlu0 %465
        %v467 = vsel %vm451, %v328, 0.0
        %468 = vadd.xlane.f32.xlu0 %v467
        %v469 = vpop.xlane.xlu0 %468
        %v470 = vsel %vm451, %v329, 0.0
        %471 = vadd.xlane.f32.xlu0 %v470
        %v472 = vpop.xlane.xlu0 %471
        %v473 = vsel %vm451, %v330, 0.0
        %474 = vadd.xlane.f32.xlu0 %v473
        %v475 = vpop.xlane.xlu0 %474
        %v476 = vsel %vm451, %v331, 0.0
        %477 = vadd.xlane.f32.xlu0 %v476
        %v478 = vpop.xlane.xlu0 %477
        %v479 = vsel %vm451, %v332, 0.0
        %480 = vadd.xlane.f32.xlu0 %v479
        %v481 = vpop.xlane.xlu0 %480
        %v482 = vsel %vm451, %v333, 0.0
        %483 = vadd.xlane.f32.xlu0 %v482
        %v484 = vpop.xlane.xlu0 %483
        %v485 = vsel %vm451, %v334, 0.0
        %486 = vadd.xlane.f32.xlu0 %v485
        %v487 = vpop.xlane.xlu0 %486
        %v488 = vsel %vm451, %v335, 0.0
        %489 = vadd.xlane.f32.xlu0 %v488
        %v490 = vpop.xlane.xlu0 %489
        %v491 = vsel %vm451, %v336, 0.0
        %492 = vadd.xlane.f32.xlu0 %v491
        %v493 = vpop.xlane.xlu0 %492
        %v494 = vsel %vm451, %v337, 0.0
        %495 = vadd.xlane.f32.xlu0 %v494
        %v496 = vpop.xlane.xlu0 %495
        %v497 = vsel %vm451, %v338, 0.0
        %498 = vadd.xlane.f32.xlu0 %v497
        %v499 = vpop.xlane.xlu0 %498
        %v500 = vsel %vm451, %v339, 0.0
        %501 = vadd.xlane.f32.xlu0 %v500
        %v502 = vpop.xlane.xlu0 %501
        %v503 = vsel %vm451, %v340, 0.0
        %504 = vadd.xlane.f32.xlu0 %v503
        %v505 = vpop.xlane.xlu0 %504
        %v506 = vsel %vm451, %v341, 0.0
        %507 = vadd.xlane.f32.xlu0 %v506
        %v508 = vpop.xlane.xlu0 %507
        %v509 = vsel %vm451, %v342, 0.0
        %510 = vadd.xlane.f32.xlu0 %v509
        %v511 = vpop.xlane.xlu0 %510
        %v512 = vsel %vm451, %v343, 0.0
        %513 = vadd.xlane.f32.xlu0 %v512
        %v514 = vpop.xlane.xlu0 %513
        %v515 = vsel %vm451, %v344, 0.0
        %516 = vadd.xlane.f32.xlu0 %v515
        %v517 = vpop.xlane.xlu0 %516
        %v518 = vsel %vm451, %v345, 0.0
        %519 = vadd.xlane.f32.xlu0 %v518
        %v520 = vpop.xlane.xlu0 %519
        %v521 = vsel %vm451, %v346, 0.0
        %522 = vadd.xlane.f32.xlu0 %v521
        %v523 = vpop.xlane.xlu0 %522
        %v524 = vsel %vm451, %v347, 0.0
        %525 = vadd.xlane.f32.xlu0 %v524
        %v526 = vpop.xlane.xlu0 %525
        %v527 = vsel %vm451, %v348, 0.0
        %528 = vadd.xlane.f32.xlu0 %v527
        %v529 = vpop.xlane.xlu0 %528
        %v530 = vsel %vm451, %v349, 0.0
        %531 = vadd.xlane.f32.xlu0 %v530
        %v532 = vpop.xlane.xlu0 %531
        %v533 = vsel %vm451, %v350, 0.0
        %534 = vadd.xlane.f32.xlu0 %v533
        %v535 = vpop.xlane.xlu0 %534
        %v536 = vsel %vm451, %v351, 0.0
        %537 = vadd.xlane.f32.xlu0 %v536
        %v538 = vpop.xlane.xlu0 %537
        %v539 = vsel %vm451, %v352, 0.0
        %540 = vadd.xlane.f32.xlu0 %v539
        %v541 = vpop.xlane.xlu0 %540
        %v542 = vsel %vm451, %v353, 0.0
        %543 = vadd.xlane.f32.xlu0 %v542
        %v544 = vpop.xlane.xlu0 %543
        %v545 = vsel %vm451, %v354, 0.0
        %546 = vadd.xlane.f32.xlu0 %v545
        %v547 = vpop.xlane.xlu0 %546
        %v548 = vsel %vm451, %v355, 0.0
        %549 = vadd.xlane.f32.xlu0 %v548
        %v550 = vpop.xlane.xlu0 %549
        %v551 = vsel %vm451, %v356, 0.0
        %552 = vadd.xlane.f32.xlu0 %v551
        %v553 = vpop.xlane.xlu0 %552
        %v554 = vsel %vm451, %v357, 0.0
        %555 = vadd.xlane.f32.xlu0 %v554
        %v556 = vpop.xlane.xlu0 %555
        %v557 = vsel %vm451, %v358, 0.0
        %558 = vadd.xlane.f32.xlu0 %v557
        %v559 = vpop.xlane.xlu0 %558
        %v560 = vsel %vm451, %v359, 0.0
        %561 = vadd.xlane.f32.xlu0 %v560
        %v562 = vpop.xlane.xlu0 %561
        %v563 = vsel %vm451, %v360, 0.0
        %564 = vadd.xlane.f32.xlu0 %v563
        %v565 = vpop.xlane.xlu0 %564
        %v566 = vsel %vm451, %v361, 0.0
        %567 = vadd.xlane.f32.xlu0 %v566
        %v568 = vpop.xlane.xlu0 %567
        %v569 = vsel %vm451, %v362, 0.0
        %570 = vadd.xlane.f32.xlu0 %v569
        %v571 = vpop.xlane.xlu0 %570
        %v572 = vsel %vm451, %v363, 0.0
        %573 = vadd.xlane.f32.xlu0 %v572
        %v574 = vpop.xlane.xlu0 %573
        %v575 = vsel %vm451, %v364, 0.0
        %576 = vadd.xlane.f32.xlu0 %v575
        %v577 = vpop.xlane.xlu0 %576
        %v578 = vsel %vm451, %v365, 0.0
        %579 = vadd.xlane.f32.xlu0 %v578
        %v580 = vpop.xlane.xlu0 %579
        %v581 = vsel %vm451, %v366, 0.0
        %582 = vadd.xlane.f32.xlu0 %v581
        %v583 = vpop.xlane.xlu0 %582
        %v584 = vsel %vm451, %v367, 0.0
        %585 = vadd.xlane.f32.xlu0 %v584
        %v586 = vpop.xlane.xlu0 %585
        %v587 = vsel %vm451, %v368, 0.0
        %588 = vadd.xlane.f32.xlu0 %v587
        %v589 = vpop.xlane.xlu0 %588
        %v590 = vsel %vm451, %v369, 0.0
        %591 = vadd.xlane.f32.xlu0 %v590
        %v592 = vpop.xlane.xlu0 %591
        %v593 = vsel %vm451, %v370, 0.0
        %594 = vadd.xlane.f32.xlu0 %v593
        %v595 = vpop.xlane.xlu0 %594
        %v596 = vsel %vm451, %v371, 0.0
        %597 = vadd.xlane.f32.xlu0 %v596
        %v598 = vpop.xlane.xlu0 %597
        %v599 = vsel %vm451, %v372, 0.0
        %600 = vadd.xlane.f32.xlu0 %v599
        %v601 = vpop.xlane.xlu0 %600
        %v602 = vsel %vm451, %v373, 0.0
        %603 = vadd.xlane.f32.xlu0 %v602
        %v604 = vpop.xlane.xlu0 %603
        %v605 = vsel %vm451, %v374, 0.0
        %606 = vadd.xlane.f32.xlu0 %v605
        %v607 = vpop.xlane.xlu0 %606
        %v608 = vsel %vm451, %v375, 0.0
        %609 = vadd.xlane.f32.xlu0 %v608
        %v610 = vpop.xlane.xlu0 %609
        %v611 = vsel %vm451, %v376, 0.0
        %612 = vadd.xlane.f32.xlu0 %v611
        %v613 = vpop.xlane.xlu0 %612
        %v614 = vsel %vm451, %v377, 0.0
        %615 = vadd.xlane.f32.xlu0 %v614
        %v616 = vpop.xlane.xlu0 %615
        %v617 = vsel %vm451, %v378, 0.0
        %618 = vadd.xlane.f32.xlu0 %v617
        %v619 = vpop.xlane.xlu0 %618
        %v620 = vsel %vm451, %v379, 0.0
        %621 = vadd.xlane.f32.xlu0 %v620
        %v622 = vpop.xlane.xlu0 %621
        %v623 = vsel %vm451, %v380, 0.0
        %624 = vadd.xlane.f32.xlu0 %v623
        %v625 = vpop.xlane.xlu0 %624
        %v626 = vsel %vm451, %v381, 0.0
        %627 = vadd.xlane.f32.xlu0 %v626
        %v628 = vpop.xlane.xlu0 %627
        %v629 = vsel %vm451, %v382, 0.0
        %630 = vadd.xlane.f32.xlu0 %v629
        %v631 = vpop.xlane.xlu0 %630
        %v632 = vsel %vm451, %v383, 0.0
        %633 = vadd.xlane.f32.xlu0 %v632
        %v634 = vpop.xlane.xlu0 %633
        %v635 = vsel %vm451, %v384, 0.0
        %636 = vadd.xlane.f32.xlu0 %v635
        %v637 = vpop.xlane.xlu0 %636
        %v638 = vsel %vm451, %v385, 0.0
        %639 = vadd.xlane.f32.xlu0 %v638
        %v640 = vpop.xlane.xlu0 %639
        %v641 = vsel %vm451, %v386, 0.0
        %642 = vadd.xlane.f32.xlu0 %v641
        %v643 = vpop.xlane.xlu0 %642
        %v644 = vsel %vm451, %v387, 0.0
        %645 = vadd.xlane.f32.xlu0 %v644
        %v646 = vpop.xlane.xlu0 %645
        %v647 = vsel %vm451, %v388, 0.0
        %648 = vadd.xlane.f32.xlu0 %v647
        %v649 = vpop.xlane.xlu0 %648
        %v650 = vsel %vm451, %v389, 0.0
        %651 = vadd.xlane.f32.xlu0 %v650
        %v652 = vpop.xlane.xlu0 %651
        %v653 = vsel %vm451, %v390, 0.0
        %654 = vadd.xlane.f32.xlu0 %v653
        %v655 = vpop.xlane.xlu0 %654
        %v656 = vsel %vm451, %v391, 0.0
        %657 = vadd.xlane.f32.xlu0 %v656
        %v658 = vpop.xlane.xlu0 %657
        %v659 = vsel %vm451, %v392, 0.0
        %660 = vadd.xlane.f32.xlu0 %v659
        %v661 = vpop.xlane.xlu0 %660
        %v662 = vsel %vm451, %v393, 0.0
        %663 = vadd.xlane.f32.xlu0 %v662
        %v664 = vpop.xlane.xlu0 %663
        %v665 = vsel %vm451, %v394, 0.0
        %666 = vadd.xlane.f32.xlu0 %v665
        %v667 = vpop.xlane.xlu0 %666
        %v668 = vsel %vm451, %v395, 0.0
        %669 = vadd.xlane.f32.xlu0 %v668
        %v670 = vpop.xlane.xlu0 %669
        %v671 = vsel %vm451, %v396, 0.0
        %672 = vadd.xlane.f32.xlu0 %v671
        %v673 = vpop.xlane.xlu0 %672
        %v674 = vsel %vm451, %v397, 0.0
        %675 = vadd.xlane.f32.xlu0 %v674
        %v676 = vpop.xlane.xlu0 %675
        %v677 = vsel %vm451, %v398, 0.0
        %678 = vadd.xlane.f32.xlu0 %v677
        %v679 = vpop.xlane.xlu0 %678
        %v680 = vsel %vm451, %v399, 0.0
        %681 = vadd.xlane.f32.xlu0 %v680
        %v682 = vpop.xlane.xlu0 %681
        %v683 = vsel %vm451, %v400, 0.0
        %684 = vadd.xlane.f32.xlu0 %v683
        %v685 = vpop.xlane.xlu0 %684
        %v686 = vsel %vm451, %v401, 0.0
        %687 = vadd.xlane.f32.xlu0 %v686
        %v688 = vpop.xlane.xlu0 %687
        %v689 = vsel %vm451, %v402, 0.0
        %690 = vadd.xlane.f32.xlu0 %v689
        %v691 = vpop.xlane.xlu0 %690
        %v692 = vsel %vm451, %v403, 0.0
        %693 = vadd.xlane.f32.xlu0 %v692
        %v694 = vpop.xlane.xlu0 %693
        %v695 = vsel %vm451, %v404, 0.0
        %696 = vadd.xlane.f32.xlu0 %v695
        %v697 = vpop.xlane.xlu0 %696
        %v698 = vsel %vm451, %v405, 0.0
        %699 = vadd.xlane.f32.xlu0 %v698
        %v700 = vpop.xlane.xlu0 %699
        %v701 = vsel %vm451, %v406, 0.0
        %702 = vadd.xlane.f32.xlu0 %v701
        %v703 = vpop.xlane.xlu0 %702
        %v704 = vsel %vm451, %v407, 0.0
        %705 = vadd.xlane.f32.xlu0 %v704
        %v706 = vpop.xlane.xlu0 %705
        %v707 = vsel %vm451, %v408, 0.0
        %708 = vadd.xlane.f32.xlu0 %v707
        %v709 = vpop.xlane.xlu0 %708
        %v710 = vsel %vm451, %v409, 0.0
        %711 = vadd.xlane.f32.xlu0 %v710
        %v712 = vpop.xlane.xlu0 %711
        %v713 = vsel %vm451, %v410, 0.0
        %714 = vadd.xlane.f32.xlu0 %v713
        %v715 = vpop.xlane.xlu0 %714
        %v716 = vsel %vm451, %v411, 0.0
        %717 = vadd.xlane.f32.xlu0 %v716
        %v718 = vpop.xlane.xlu0 %717
        %v719 = vsel %vm451, %v412, 0.0
        %720 = vadd.xlane.f32.xlu0 %v719
        %v721 = vpop.xlane.xlu0 %720
        %v722 = vsel %vm451, %v413, 0.0
        %723 = vadd.xlane.f32.xlu0 %v722
        %v724 = vpop.xlane.xlu0 %723
        %v725 = vsel %vm451, %v414, 0.0
        %726 = vadd.xlane.f32.xlu0 %v725
        %v727 = vpop.xlane.xlu0 %726
        %v728 = vsel %vm451, %v415, 0.0
        %729 = vadd.xlane.f32.xlu0 %v728
        %v730 = vpop.xlane.xlu0 %729
        %v731 = vsel %vm451, %v416, 0.0
        %732 = vadd.xlane.f32.xlu0 %v731
        %v733 = vpop.xlane.xlu0 %732
        %v734 = vsel %vm451, %v417, 0.0
        %735 = vadd.xlane.f32.xlu0 %v734
        %v736 = vpop.xlane.xlu0 %735
        %v737 = vsel %vm451, %v418, 0.0
        %738 = vadd.xlane.f32.xlu0 %v737
        %v739 = vpop.xlane.xlu0 %738
        %v740 = vsel %vm451, %v419, 0.0
        %741 = vadd.xlane.f32.xlu0 %v740
        %v742 = vpop.xlane.xlu0 %741
        %v743 = vsel %vm451, %v420, 0.0
        %744 = vadd.xlane.f32.xlu0 %v743
        %v745 = vpop.xlane.xlu0 %744
        %v746 = vsel %vm451, %v421, 0.0
        %747 = vadd.xlane.f32.xlu0 %v746
        %v748 = vpop.xlane.xlu0 %747
        %v749 = vsel %vm451, %v422, 0.0
        %750 = vadd.xlane.f32.xlu0 %v749
        %v751 = vpop.xlane.xlu0 %750
        %v752 = vsel %vm451, %v423, 0.0
        %753 = vadd.xlane.f32.xlu0 %v752
        %v754 = vpop.xlane.xlu0 %753
        %v755 = vsel %vm451, %v424, 0.0
        %756 = vadd.xlane.f32.xlu0 %v755
        %v757 = vpop.xlane.xlu0 %756
        %v758 = vsel %vm451, %v425, 0.0
        %759 = vadd.xlane.f32.xlu0 %v758
        %v760 = vpop.xlane.xlu0 %759
        %v761 = vsel %vm451, %v426, 0.0
        %762 = vadd.xlane.f32.xlu0 %v761
        %v763 = vpop.xlane.xlu0 %762
        %v764 = vsel %vm451, %v427, 0.0
        %765 = vadd.xlane.f32.xlu0 %v764
        %v766 = vpop.xlane.xlu0 %765
        %v767 = vsel %vm451, %v428, 0.0
        %768 = vadd.xlane.f32.xlu0 %v767
        %v769 = vpop.xlane.xlu0 %768
        %v770 = vsel %vm451, %v429, 0.0
        %771 = vadd.xlane.f32.xlu0 %v770
        %v772 = vpop.xlane.xlu0 %771
        %v773 = vsel %vm451, %v430, 0.0
        %774 = vadd.xlane.f32.xlu0 %v773
        %v775 = vpop.xlane.xlu0 %774
        %v776 = vsel %vm451, %v431, 0.0
        %777 = vadd.xlane.f32.xlu0 %v776
        %v778 = vpop.xlane.xlu0 %777
        %v779 = vsel %vm451, %v432, 0.0
        %780 = vadd.xlane.f32.xlu0 %v779
        %v781 = vpop.xlane.xlu0 %780
        %v782 = vsel %vm451, %v433, 0.0
        %783 = vadd.xlane.f32.xlu0 %v782
        %v784 = vpop.xlane.xlu0 %783
        %v785 = vsel %vm451, %v434, 0.0
        %786 = vadd.xlane.f32.xlu0 %v785
        %v787 = vpop.xlane.xlu0 %786
        %v788 = vsel %vm451, %v435, 0.0
        %789 = vadd.xlane.f32.xlu0 %v788
        %v790 = vpop.xlane.xlu0 %789
        %v791 = vsel %vm451, %v436, 0.0
        %792 = vadd.xlane.f32.xlu0 %v791
        %v793 = vpop.xlane.xlu0 %792
        %v794 = vsel %vm451, %v437, 0.0
        %795 = vadd.xlane.f32.xlu0 %v794
        %v796 = vpop.xlane.xlu0 %795
        %v797 = vsel %vm451, %v438, 0.0
        %798 = vadd.xlane.f32.xlu0 %v797
        %v799 = vpop.xlane.xlu0 %798
        %v800 = vsel %vm451, %v439, 0.0
        %801 = vadd.xlane.f32.xlu0 %v800
        %v802 = vpop.xlane.xlu0 %801
        %v803 = vsel %vm451, %v440, 0.0
        %804 = vadd.xlane.f32.xlu0 %v803
        %v805 = vpop.xlane.xlu0 %804
        %v806 = vsel %vm451, %v441, 0.0
        %807 = vadd.xlane.f32.xlu0 %v806
        %v808 = vpop.xlane.xlu0 %807
        %v809 = vsel %vm451, %v442, 0.0
        %810 = vadd.xlane.f32.xlu0 %v809
        %v811 = vpop.xlane.xlu0 %810
        %v812 = vsel %vm451, %v443, 0.0
        %813 = vadd.xlane.f32.xlu0 %v812
        %v814 = vpop.xlane.xlu0 %813
        %v815 = vsel %vm451, %v444, 0.0
        %816 = vadd.xlane.f32.xlu0 %v815
        %v817 = vpop.xlane.xlu0 %816
        %v818 = vsel %vm451, %v445, 0.0
        %819 = vadd.xlane.f32.xlu0 %v818
        %v820 = vpop.xlane.xlu0 %819
        %v821 = vsel %vm451, %v446, 0.0
        %822 = vadd.xlane.f32.xlu0 %v821
        %v823 = vpop.xlane.xlu0 %822
        %v824 = vsel %vm451, %v447, 0.0
        %825 = vadd.xlane.f32.xlu0 %v824
        %v826 = vpop.xlane.xlu0 %825
        %v827 = vsel %vm451, %v448, 0.0
        %828 = vadd.xlane.f32.xlu0 %v827
        %v829 = vpop.xlane.xlu0 %828
        %v830 = vsel %vm451, %v449, 0.0
        %831 = vadd.xlane.f32.xlu0 %v830
        %v832 = vpop.xlane.xlu0 %831
        %v833 = vsel %vm451, %v450, 0.0
        %834 = vadd.xlane.f32.xlu0 %v833
        %v835 = vpop.xlane.xlu0 %834
        %v836 = vld [vmem:[%s190] sm:$0xff]
        %vm837 = vcmp.ne.s32.totalorder %v836, 0
        %v966 = vlaneseq
        %v967 = vand.u32 %v966, 127
        %v968 = vperm.slane %v454, %v967
        %v969 = vadd.s32 %v967, 4294967288
        %v970 = vperm.slane %v457, %v969
        %vm971 = vcmask 130112
        %v972 = vsel %vm971, %v970, %v968
        %v973 = vadd.s32 %v967, 4294967280
        %v974 = vperm.slane %v460, %v973
        %vm975 = vcmask 195712
        %v976 = vsel %vm975, %v974, %v972
        %v977 = vadd.s32 %v967, 4294967272
        %v978 = vperm.slane %v463, %v977
        %vm979 = vcmask 261312
        %v980 = vsel %vm979, %v978, %v976
        %v981 = vadd.s32 %v967, 4294967264
        %v982 = vperm.slane %v466, %v981
        %vm983 = vcmask 326912
        %v984 = vsel %vm983, %v982, %v980
        %v985 = vadd.s32 %v967, 4294967256
        %v986 = vperm.slane %v469, %v985
        %vm987 = vcmask 392512
        %v988 = vsel %vm987, %v986, %v984
        %v989 = vadd.s32 %v967, 4294967248
        %v990 = vperm.slane %v472, %v989
        %vm991 = vcmask 458112
        %v992 = vsel %vm991, %v990, %v988
        %v993 = vadd.s32 %v967, 4294967240
        %v994 = vperm.slane %v475, %v993
        %vm995 = vcmask 523712
        %v996 = vsel %vm995, %v994, %v992
        %v997 = vadd.s32 %v967, 4294967232
        %v998 = vperm.slane %v478, %v997
        %vm999 = vcmask 589312
        %v1000 = vsel %vm999, %v998, %v996
        %v1001 = vadd.s32 %v967, 4294967224
        %v1002 = vperm.slane %v481, %v1001
        %vm1003 = vcmask 654912
        %v1004 = vsel %vm1003, %v1002, %v1000
        %v1005 = vadd.s32 %v967, 4294967216
        %v1006 = vperm.slane %v484, %v1005
        %vm1007 = vcmask 720512
        %v1008 = vsel %vm1007, %v1006, %v1004
        %v1009 = vadd.s32 %v967, 4294967208
        %v1010 = vperm.slane %v487, %v1009
        %vm1011 = vcmask 786112
        %v1012 = vsel %vm1011, %v1010, %v1008
        %v1013 = vadd.s32 %v967, 4294967200
        %v1014 = vperm.slane %v490, %v1013
        %vm1015 = vcmask 851712
        %v1016 = vsel %vm1015, %v1014, %v1012
        %v1017 = vadd.s32 %v967, 4294967192
        %v1018 = vperm.slane %v493, %v1017
        %vm1019 = vcmask 917312
        %v1020 = vsel %vm1019, %v1018, %v1016
        %v1021 = vadd.s32 %v967, 4294967184
        %v1022 = vperm.slane %v496, %v1021
        %vm1023 = vcmask 982912
        %v1024 = vsel %vm1023, %v1022, %v1020
        %v1025 = vadd.s32 %v967, 4294967176
        %v1026 = vperm.slane %v499, %v1025
        %vm1027 = vcmask 1048512
        %v1028 = vsel %vm1027, %v1026, %v1024
        %v1029 = vperm.slane %v502, %v967
        %v1030 = vperm.slane %v505, %v969
        %v1031 = vsel %vm971, %v1030, %v1029
        %v1032 = vperm.slane %v508, %v973
        %v1033 = vsel %vm975, %v1032, %v1031
        %v1034 = vperm.slane %v511, %v977
        %v1035 = vsel %vm979, %v1034, %v1033
        %v1036 = vperm.slane %v514, %v981
        %v1037 = vsel %vm983, %v1036, %v1035
        %v1038 = vperm.slane %v517, %v985
        %v1039 = vsel %vm987, %v1038, %v1037
        %v1040 = vperm.slane %v520, %v989
        %v1041 = vsel %vm991, %v1040, %v1039
        %v1042 = vperm.slane %v523, %v993
        %v1043 = vsel %vm995, %v1042, %v1041
        %v1044 = vperm.slane %v526, %v997
        %v1045 = vsel %vm999, %v1044, %v1043
        %v1046 = vperm.slane %v529, %v1001
        %v1047 = vsel %vm1003, %v1046, %v1045
        %v1048 = vperm.slane %v532, %v1005
        %v1049 = vsel %vm1007, %v1048, %v1047
        %v1050 = vperm.slane %v535, %v1009
        %v1051 = vsel %vm1011, %v1050, %v1049
        %v1052 = vperm.slane %v538, %v1013
        %v1053 = vsel %vm1015, %v1052, %v1051
        %v1054 = vperm.slane %v541, %v1017
        %v1055 = vsel %vm1019, %v1054, %v1053
        %v1056 = vperm.slane %v544, %v1021
        %v1057 = vsel %vm1023, %v1056, %v1055
        %v1058 = vperm.slane %v547, %v1025
        %v1059 = vsel %vm1027, %v1058, %v1057
        %v1060 = vperm.slane %v550, %v967
        %v1061 = vperm.slane %v553, %v969
        %v1062 = vsel %vm971, %v1061, %v1060
        %v1063 = vperm.slane %v556, %v973
        %v1064 = vsel %vm975, %v1063, %v1062
        %v1065 = vperm.slane %v559, %v977
        %v1066 = vsel %vm979, %v1065, %v1064
        %v1067 = vperm.slane %v562, %v981
        %v1068 = vsel %vm983, %v1067, %v1066
        %v1069 = vperm.slane %v565, %v985
        %v1070 = vsel %vm987, %v1069, %v1068
        %v1071 = vperm.slane %v568, %v989
        %v1072 = vsel %vm991, %v1071, %v1070
        %v1073 = vperm.slane %v571, %v993
        %v1074 = vsel %vm995, %v1073, %v1072
        %v1075 = vperm.slane %v574, %v997
        %v1076 = vsel %vm999, %v1075, %v1074
        %v1077 = vperm.slane %v577, %v1001
        %v1078 = vsel %vm1003, %v1077, %v1076
        %v1079 = vperm.slane %v580, %v1005
        %v1080 = vsel %vm1007, %v1079, %v1078
        %v1081 = vperm.slane %v583, %v1009
        %v1082 = vsel %vm1011, %v1081, %v1080
        %v1083 = vperm.slane %v586, %v1013
        %v1084 = vsel %vm1015, %v1083, %v1082
        %v1085 = vperm.slane %v589, %v1017
        %v1086 = vsel %vm1019, %v1085, %v1084
        %v1087 = vperm.slane %v592, %v1021
        %v1088 = vsel %vm1023, %v1087, %v1086
        %v1089 = vperm.slane %v595, %v1025
        %v1090 = vsel %vm1027, %v1089, %v1088
        %v1091 = vperm.slane %v598, %v967
        %v1092 = vperm.slane %v601, %v969
        %v1093 = vsel %vm971, %v1092, %v1091
        %v1094 = vperm.slane %v604, %v973
        %v1095 = vsel %vm975, %v1094, %v1093
        %v1096 = vperm.slane %v607, %v977
        %v1097 = vsel %vm979, %v1096, %v1095
        %v1098 = vperm.slane %v610, %v981
        %v1099 = vsel %vm983, %v1098, %v1097
        %v1100 = vperm.slane %v613, %v985
        %v1101 = vsel %vm987, %v1100, %v1099
        %v1102 = vperm.slane %v616, %v989
        %v1103 = vsel %vm991, %v1102, %v1101
        %v1104 = vperm.slane %v619, %v993
        %v1105 = vsel %vm995, %v1104, %v1103
        %v1106 = vperm.slane %v622, %v997
        %v1107 = vsel %vm999, %v1106, %v1105
        %v1108 = vperm.slane %v625, %v1001
        %v1109 = vsel %vm1003, %v1108, %v1107
        %v1110 = vperm.slane %v628, %v1005
        %v1111 = vsel %vm1007, %v1110, %v1109
        %v1112 = vperm.slane %v631, %v1009
        %v1113 = vsel %vm1011, %v1112, %v1111
        %v1114 = vperm.slane %v634, %v1013
        %v1115 = vsel %vm1015, %v1114, %v1113
        %v1116 = vperm.slane %v637, %v1017
        %v1117 = vsel %vm1019, %v1116, %v1115
        %v1118 = vperm.slane %v640, %v1021
        %v1119 = vsel %vm1023, %v1118, %v1117
        %v1120 = vperm.slane %v643, %v1025
        %v1121 = vsel %vm1027, %v1120, %v1119
        %v1122 = vperm.slane %v646, %v967
        %v1123 = vperm.slane %v649, %v969
        %v1124 = vsel %vm971, %v1123, %v1122
        %v1125 = vperm.slane %v652, %v973
        %v1126 = vsel %vm975, %v1125, %v1124
        %v1127 = vperm.slane %v655, %v977
        %v1128 = vsel %vm979, %v1127, %v1126
        %v1129 = vperm.slane %v658, %v981
        %v1130 = vsel %vm983, %v1129, %v1128
        %v1131 = vperm.slane %v661, %v985
        %v1132 = vsel %vm987, %v1131, %v1130
        %v1133 = vperm.slane %v664, %v989
        %v1134 = vsel %vm991, %v1133, %v1132
        %v1135 = vperm.slane %v667, %v993
        %v1136 = vsel %vm995, %v1135, %v1134
        %v1137 = vperm.slane %v670, %v997
        %v1138 = vsel %vm999, %v1137, %v1136
        %v1139 = vperm.slane %v673, %v1001
        %v1140 = vsel %vm1003, %v1139, %v1138
        %v1141 = vperm.slane %v676, %v1005
        %v1142 = vsel %vm1007, %v1141, %v1140
        %v1143 = vperm.slane %v679, %v1009
        %v1144 = vsel %vm1011, %v1143, %v1142
        %v1145 = vperm.slane %v682, %v1013
        %v1146 = vsel %vm1015, %v1145, %v1144
        %v1147 = vperm.slane %v685, %v1017
        %v1148 = vsel %vm1019, %v1147, %v1146
        %v1149 = vperm.slane %v688, %v1021
        %v1150 = vsel %vm1023, %v1149, %v1148
        %v1151 = vperm.slane %v691, %v1025
        %v1152 = vsel %vm1027, %v1151, %v1150
        %v1153 = vperm.slane %v694, %v967
        %v1154 = vperm.slane %v697, %v969
        %v1155 = vsel %vm971, %v1154, %v1153
        %v1156 = vperm.slane %v700, %v973
        %v1157 = vsel %vm975, %v1156, %v1155
        %v1158 = vperm.slane %v703, %v977
        %v1159 = vsel %vm979, %v1158, %v1157
        %v1160 = vperm.slane %v706, %v981
        %v1161 = vsel %vm983, %v1160, %v1159
        %v1162 = vperm.slane %v709, %v985
        %v1163 = vsel %vm987, %v1162, %v1161
        %v1164 = vperm.slane %v712, %v989
        %v1165 = vsel %vm991, %v1164, %v1163
        %v1166 = vperm.slane %v715, %v993
        %v1167 = vsel %vm995, %v1166, %v1165
        %v1168 = vperm.slane %v718, %v997
        %v1169 = vsel %vm999, %v1168, %v1167
        %v1170 = vperm.slane %v721, %v1001
        %v1171 = vsel %vm1003, %v1170, %v1169
        %v1172 = vperm.slane %v724, %v1005
        %v1173 = vsel %vm1007, %v1172, %v1171
        %v1174 = vperm.slane %v727, %v1009
        %v1175 = vsel %vm1011, %v1174, %v1173
        %v1176 = vperm.slane %v730, %v1013
        %v1177 = vsel %vm1015, %v1176, %v1175
        %v1178 = vperm.slane %v733, %v1017
        %v1179 = vsel %vm1019, %v1178, %v1177
        %v1180 = vperm.slane %v736, %v1021
        %v1181 = vsel %vm1023, %v1180, %v1179
        %v1182 = vperm.slane %v739, %v1025
        %v1183 = vsel %vm1027, %v1182, %v1181
        %v1184 = vperm.slane %v742, %v967
        %v1185 = vperm.slane %v745, %v969
        %v1186 = vsel %vm971, %v1185, %v1184
        %v1187 = vperm.slane %v748, %v973
        %v1188 = vsel %vm975, %v1187, %v1186
        %v1189 = vperm.slane %v751, %v977
        %v1190 = vsel %vm979, %v1189, %v1188
        %v1191 = vperm.slane %v754, %v981
        %v1192 = vsel %vm983, %v1191, %v1190
        %v1193 = vperm.slane %v757, %v985
        %v1194 = vsel %vm987, %v1193, %v1192
        %v1195 = vperm.slane %v760, %v989
        %v1196 = vsel %vm991, %v1195, %v1194
        %v1197 = vperm.slane %v763, %v993
        %v1198 = vsel %vm995, %v1197, %v1196
        %v1199 = vperm.slane %v766, %v997
        %v1200 = vsel %vm999, %v1199, %v1198
        %v1201 = vperm.slane %v769, %v1001
        %v1202 = vsel %vm1003, %v1201, %v1200
        %v1203 = vperm.slane %v772, %v1005
        %v1204 = vsel %vm1007, %v1203, %v1202
        %v1205 = vperm.slane %v775, %v1009
        %v1206 = vsel %vm1011, %v1205, %v1204
        %v1207 = vperm.slane %v778, %v1013
        %v1208 = vsel %vm1015, %v1207, %v1206
        %v1209 = vperm.slane %v781, %v1017
        %v1210 = vsel %vm1019, %v1209, %v1208
        %v1211 = vperm.slane %v784, %v1021
        %v1212 = vsel %vm1023, %v1211, %v1210
        %v1213 = vperm.slane %v787, %v1025
        %v1214 = vsel %vm1027, %v1213, %v1212
        %v1215 = vperm.slane %v790, %v967
        %v1216 = vperm.slane %v793, %v969
        %v1217 = vsel %vm971, %v1216, %v1215
        %v1218 = vperm.slane %v796, %v973
        %v1219 = vsel %vm975, %v1218, %v1217
        %v1220 = vperm.slane %v799, %v977
        %v1221 = vsel %vm979, %v1220, %v1219
        %v1222 = vperm.slane %v802, %v981
        %v1223 = vsel %vm983, %v1222, %v1221
        %v1224 = vperm.slane %v805, %v985
        %v1225 = vsel %vm987, %v1224, %v1223
        %v1226 = vperm.slane %v808, %v989
        %v1227 = vsel %vm991, %v1226, %v1225
        %v1228 = vperm.slane %v811, %v993
        %v1229 = vsel %vm995, %v1228, %v1227
        %v1230 = vperm.slane %v814, %v997
        %v1231 = vsel %vm999, %v1230, %v1229
        %v1232 = vperm.slane %v817, %v1001
        %v1233 = vsel %vm1003, %v1232, %v1231
        %v1234 = vperm.slane %v820, %v1005
        %v1235 = vsel %vm1007, %v1234, %v1233
        %v1236 = vperm.slane %v823, %v1009
        %v1237 = vsel %vm1011, %v1236, %v1235
        %v1238 = vperm.slane %v826, %v1013
        %v1239 = vsel %vm1015, %v1238, %v1237
        %v1240 = vperm.slane %v829, %v1017
        %v1241 = vsel %vm1019, %v1240, %v1239
        %v1242 = vperm.slane %v832, %v1021
        %v1243 = vsel %vm1023, %v1242, %v1241
        %v1244 = vperm.slane %v835, %v1025
        %v1245 = vsel %vm1027, %v1244, %v1243
        %vm1246 = vcmask 1041409
        %v1247 = vsel %vm1246, %v1059, %v1028
        %vm1248 = vcmask 1042434
        %v1249 = vsel %vm1248, %v1090, %v1247
        %vm1250 = vcmask 1043459
        %v1251 = vsel %vm1250, %v1121, %v1249
        %vm1252 = vcmask 1044484
        %v1253 = vsel %vm1252, %v1152, %v1251
        %vm1254 = vcmask 1045509
        %v1255 = vsel %vm1254, %v1183, %v1253
        %vm1256 = vcmask 1046534
        %v1257 = vsel %vm1256, %v1214, %v1255
        %vm1258 = vcmask 1047559
        %v1259 = vsel %vm1258, %v1245, %v1257
        %v1261 = vsel %vm837, -inf, %v1259
        %1262 = vmax.xlane.f32.xlu0 %v1261
        %v1263 = vpop.xlane.xlu0 %1262
        %v1264 = vsub.f32 %v1261, %v1263
        %v1265 = vmul.f32 %v1264, 1.442695
        %v1266 = vpow.pop %v1265
        %1267 = vadd.xlane.f32.xlu0 %v1266
        %v1268 = vpop.xlane.xlu0 %1267
        %v1269 = vrcp.pop %v1268
        %v1270 = vmul.f32 %v1268, %v1269
        %v1271 = vsub.f32 1.0, %v1270
        %v1272 = vmul.f32 %v1269, %v1271
        %v1273 = vadd.f32 %v1269, %v1272
        %vm1274 = vweird.f32 %v1268
        %vm1275 = vweird.f32 %v1269
        %vm1276 = vmor %vm1274, %vm1275
        %v1277 = vsel %vm1276, %v1269, %v1273
        %v1278 = vand.u32 2147483647, %v1268
        %vm1279 = vcmp.eq.f32.partialorder %v1278, 8.507059e+37
        %v1280 = vand.u32 %v1268, 2147483648
        %v1281 = vor.u32 1.1754944e-38, %v1280
        %v1282 = vsel %vm1279, %v1281, %v1277
        %v1283 = vmul.f32 %v1266, %v1282
        %1284 = vst [vmem:[%s179] sm:$0xff] %v1283
        %s1285 = sand.u32 %s98, 1
        %s1286 = scalar_lea.sflag [#allocation3], %s1285
        %s1287 = sand.u32 %s98, 1
        %s1288 = smul.addr %s1287, 8
        %s1289 = scalar_lea.vmem [#allocation2], %s1288
        // Predicated region
        $region33: #{tpu_custom_call.1} parent=31 // pred_check
          %p1290 = pneg %p108
        $region34: #{tpu_custom_call.1} parent=31 // pred_check_branch
          %1292 = sbr.rel (%p1290) target = $region36
        $region35: #{tpu_custom_call.1} parent=31 // pred_region
          %1294 = vsyncadd %s1286, 0
          %s1295 = smul.addr %s17, 8
          %s1296 = scalar_lea.hbm %s3, %s1295
          %s1298 = sshll.u32 %s1289, 4
          %s1299 = int_to_ptr.vmem [resolvable:$true] %s1298
          %s1300 = sshll.u32 %s1296, 4
          %s1301 = int_to_ptr.hbm [resolvable:$true] %s1300
          %1303 = dma.vmem_to_hbm [thread:$0]  %s1299, 128, %s1301, %s1286
        $region36: #{tpu_custom_call.1} parent=31 // pred_fallthru
          _
      $region32: #{tpu_custom_call.1} parent=5 // pred_fallthru
        _
      %p1304 = scmp.le.s32.totalorder 2, %s12
      // Predicated region
      $region37: #{tpu_custom_call.1} parent=5 // pred_check
        %p1305 = pneg %p1304
      $region38: #{tpu_custom_call.1} parent=5 // pred_check_branch
        %1307 = sbr.rel (%p1305) target = $region40
      $region39: #{tpu_custom_call.1} parent=5 // pred_region
        %s1308 = ssub.s32 %s12, 2
        // Predicated region
        $region41: #{tpu_custom_call.1} parent=39 // pred_check
          %p1309 = pneg %p114
        $region42: #{tpu_custom_call.1} parent=39 // pred_check_branch
          %1311 = sbr.rel (%p1309) target = $region44
        $region43: #{tpu_custom_call.1} parent=39 // pred_region
          %s1312 = sand.u32 %s99, 1
          %s1313 = scalar_lea.sflag [#allocation3], %s1312
          %s1314 = sand.u32 %s99, 1
          %s1315 = smul.addr %s1314, 8
          %s1316 = scalar_lea.vmem [#allocation2], %s1315
          %1318 = dma.done %s1313, 128
        $region44: #{tpu_custom_call.1} parent=39 // pred_fallthru
          _
      $region40: #{tpu_custom_call.1} parent=5 // pred_fallthru
        _
    $region6: #{tpu_custom_call.1} parent=1 // loop_footer
      %s16 = sadd.s32 1, %s12
    $region7: #{tpu_custom_call.1} parent=1 // loop_footer_branch
      %11 = sbr.rel target = $region3
    $region8: #{tpu_custom_call.1} parent=1 // loop_exit
      _
    %1319 = vsyncpa [#allocation3], 1
    %s1320 = scalar_lea.sflag [#allocation3], 1
    %1321 = vsyncpa %s1320, 1

</llo_original>
